<compile_context>
chip_gen: v7x
topology: tpu7x:2x2x1
jax: 0.10.0
libtpu: 0.0.40
codegen_flags: <defaults>
</compile_context>

<pallas_src>
import jax
import jax.numpy as jnp
from jax.experimental import pallas as pl
from jax.experimental.pallas import tpu as pltpu


def _gather_rows_kernel(t_ref, emb_hbm_ref, out_hbm_ref, sem):
    """Fire all B embedding-row DMAs (HBM table -> HBM output), then wait.

    t_ref       : SMEM int32 [B]             (scalar prefetch)
    emb_hbm_ref : HBM  f32  [timesteps, HW]  (raw ref, memory_space=pl.ANY)
    out_hbm_ref : HBM  f32  [B, HW]          (raw ref, memory_space=pl.ANY)
    sem         : single shared DMA semaphore
    """
    B = out_hbm_ref.shape[0]
    timesteps = emb_hbm_ref.shape[0]

    copies = []
    # Start every row copy before waiting on any -> all DMAs in flight at once.
    for i in range(B):  # B is small & static; fully unrolled.
        # In-kernel scalar clamp so a bad index can never become an
        # out-of-bounds DMA source address (wrapper-side clip removed).
        idx = jnp.clip(t_ref[i], 0, timesteps - 1)
        cp = pltpu.make_async_copy(
            emb_hbm_ref.at[pl.ds(idx, 1), :],   # (1, HW) source row
            out_hbm_ref.at[pl.ds(i, 1), :],     # (1, HW) destination row
            sem,
        )
        cp.start()
        copies.append(cp)
    for cp in copies:
        cp.wait()


def time_embedding_forward(t: jax.Array, emb_table: jax.Array, size):
    """Pallas implementation of TimeEmbedding.forward.

    t:          int [B]                 timestep indices
    emb_table:  f32 [timesteps, H*W]    embedding weight
    returns:    f32 [B, 1, H, W]
    """
    H, W = size
    HW = H * W
    B = t.shape[0]
    timesteps, emb_dim = emb_table.shape
    assert emb_dim == HW, (emb_dim, HW)

    # int32 is plenty for timestep counts; clamping is done inside the kernel.
    t_idx = t.astype(jnp.int32)

    out_flat = pl.pallas_call(
        _gather_rows_kernel,
        out_shape=jax.ShapeDtypeStruct((B, HW), emb_table.dtype),
        grid_spec=pltpu.PrefetchScalarGridSpec(
            num_scalar_prefetch=1,
            grid=(1,),  # single invocation: no per-row pipeline-step overhead
            in_specs=[
                # Table stays in HBM; kernel DMAs the selected rows itself.
                pl.BlockSpec(memory_space=pl.ANY),
            ],
            # Output stays in HBM too: rows are written by DMA directly,
            # no VMEM staging slab, no epilogue writeback.
            out_specs=pl.BlockSpec(memory_space=pl.ANY),
            scratch_shapes=[pltpu.SemaphoreType.DMA(())],
        ),
        compiler_params=pltpu.CompilerParams(
            dimension_semantics=("arbitrary",),
        ),
    )(t_idx, emb_table)

    # Metadata-only reshape (no data movement).
    return out_flat.reshape(B, 1, H, W)


if __name__ == "__main__":
    # Module config (small, consistent with the forward pass)
    timesteps = 32
    size = (16, 16)          # (H, W) -> HW = 256
    B = 2

    key = jax.random.PRNGKey(0)
    k_emb, k_t = jax.random.split(key)

    # nn.Embedding default init: N(0, 1). Kept in f32 to match the PyTorch
    # module; switch to bf16 here if the surrounding model runs bf16.
    emb_table = jax.random.normal(
        k_emb, (timesteps, size[0] * size[1]), dtype=jnp.float32
    )
    t = jax.random.randint(k_t, (B,), 0, timesteps, dtype=jnp.int32)

    out = time_embedding_forward(t, emb_table, size)
    out = jax.block_until_ready(out)

    # Reference check (pure JAX gather + reshape)
    ref = jnp.take(emb_table, t, axis=0).reshape(B, 1, size[0], size[1])
    assert out.shape == (B, 1, size[0], size[1]), out.shape
    assert jnp.allclose(out, ref), "mismatch vs reference embedding lookup"

    print("KERNEL_OK")
</pallas_src>

<mosaic_0001>
module attributes {stable_mosaic.version = 11 : i64} {
  func.func @_gather_rows_kernel(%arg0: i32, %arg1: memref<2xi32, #tpu.memory_space<smem>>, %arg2: memref<32x256xf32, #tpu.memory_space<any>>, %arg3: memref<2x256xf32, #tpu.memory_space<any>>, %arg4: memref<!tpu.dma_semaphore, #tpu.memory_space<semaphore_mem>>) attributes {dimension_semantics = [#tpu.dimension_semantics<arbitrary>], iteration_bounds = array<i64: 1>, scalar_prefetch = 1 : i64, scratch_operands = 1 : i64, tpu.core_type = #tpu.core_type<tc>, window_params = [{}, {}]} {
    %c0 = arith.constant 0 : index
    %0 = memref.load %arg1[%c0] : memref<2xi32, #tpu.memory_space<smem>>
    %c0_i32 = arith.constant 0 : i32
    %c31_i32 = arith.constant 31 : i32
    %1 = arith.maxsi %c0_i32, %0 : i32
    %2 = arith.minsi %c31_i32, %1 : i32
    %c0_i32_0 = arith.constant 0 : i32
    %3 = tpu.memref_slice %arg2[%2, %c0_i32_0] : memref<32x256xf32, #tpu.memory_space<any>> -> memref<1x256xf32, #tpu.memory_space<any>>
    %c0_i32_1 = arith.constant 0 : i32
    %c0_i32_2 = arith.constant 0 : i32
    %4 = tpu.memref_slice %arg3[%c0_i32_1, %c0_i32_2] : memref<2x256xf32, #tpu.memory_space<any>> -> memref<1x256xf32, #tpu.memory_space<any>>
    tpu.enqueue_dma source(%3 : memref<1x256xf32, #tpu.memory_space<any>>) target(%4 : memref<1x256xf32, #tpu.memory_space<any>>) target_semaphore(%arg4 : memref<!tpu.dma_semaphore, #tpu.memory_space<semaphore_mem>>)
    %c1 = arith.constant 1 : index
    %5 = memref.load %arg1[%c1] : memref<2xi32, #tpu.memory_space<smem>>
    %c0_i32_3 = arith.constant 0 : i32
    %c31_i32_4 = arith.constant 31 : i32
    %6 = arith.maxsi %c0_i32_3, %5 : i32
    %7 = arith.minsi %c31_i32_4, %6 : i32
    %c0_i32_5 = arith.constant 0 : i32
    %8 = tpu.memref_slice %arg2[%7, %c0_i32_5] : memref<32x256xf32, #tpu.memory_space<any>> -> memref<1x256xf32, #tpu.memory_space<any>>
    %c1_i32 = arith.constant 1 : i32
    %c0_i32_6 = arith.constant 0 : i32
    %9 = tpu.memref_slice %arg3[%c1_i32, %c0_i32_6] : memref<2x256xf32, #tpu.memory_space<any>> -> memref<1x256xf32, #tpu.memory_space<any>>
    tpu.enqueue_dma source(%8 : memref<1x256xf32, #tpu.memory_space<any>>) target(%9 : memref<1x256xf32, #tpu.memory_space<any>>) target_semaphore(%arg4 : memref<!tpu.dma_semaphore, #tpu.memory_space<semaphore_mem>>)
    %c0_i32_7 = arith.constant 0 : i32
    %10 = tpu.memref_slice %arg2[%2, %c0_i32_7] : memref<32x256xf32, #tpu.memory_space<any>> -> memref<1x256xf32, #tpu.memory_space<any>>
    %c0_i32_8 = arith.constant 0 : i32
    %c0_i32_9 = arith.constant 0 : i32
    %11 = tpu.memref_slice %arg3[%c0_i32_8, %c0_i32_9] : memref<2x256xf32, #tpu.memory_space<any>> -> memref<1x256xf32, #tpu.memory_space<any>>
    tpu.wait_dma2 semaphore(%arg4 : memref<!tpu.dma_semaphore, #tpu.memory_space<semaphore_mem>>) src(%10 : memref<1x256xf32, #tpu.memory_space<any>>) dst(%11 : memref<1x256xf32, #tpu.memory_space<any>>)
    %c0_i32_10 = arith.constant 0 : i32
    %12 = tpu.memref_slice %arg2[%7, %c0_i32_10] : memref<32x256xf32, #tpu.memory_space<any>> -> memref<1x256xf32, #tpu.memory_space<any>>
    %c1_i32_11 = arith.constant 1 : i32
    %c0_i32_12 = arith.constant 0 : i32
    %13 = tpu.memref_slice %arg3[%c1_i32_11, %c0_i32_12] : memref<2x256xf32, #tpu.memory_space<any>> -> memref<1x256xf32, #tpu.memory_space<any>>
    tpu.wait_dma2 semaphore(%arg4 : memref<!tpu.dma_semaphore, #tpu.memory_space<semaphore_mem>>) src(%12 : memref<1x256xf32, #tpu.memory_space<any>>) dst(%13 : memref<1x256xf32, #tpu.memory_space<any>>)
    return
  }
}

</mosaic_0001>

<llo_original>
// kernel: tpu_custom_call.1
$region0: #{tpu_custom_call.1}
  #allocation0 [shape = 'u32[]', space=smem, size = 0x4, offset = 0x4, fixed_abs, tag = 'smem constant byte address 0x4 - core index']
  #allocation1 [shape = 'u32[144,128]{1,0:T(1,128)}', space=vmem, size = 0x12000, scoped, tag = 'internal scratch']
  #allocation2 [shape = 's32[1]{0}', space=sflag, size = 0x4, scoped, tag = 'scratch operand']
  #allocation3 [shape = 's32[1]{0}', space=sflag, size = 0x4, scoped, tag = 'scoped memory for tpu_custom_call.1']
  #allocation4 [shape = 'u8[512]{0}', space=smem, size = 0x200, scoped, tag = 'prefetched SMEM operand 0']
  #allocation5 [shape = 's32[]', space=sflag, size = 0x4, offset = 0, fixed_abs, tag = 'sflag constant byte address 0x0 - dummy sync flag']
  #allocation7 [shape = 's32[]', space=sflag, size = 0x4, offset = 0, fixed_abs, tag = 'sflag constant byte address 0x0 - dummy sync flag']
  %s0 = inlined_call_operand.hbm [shape: s32[2], index: 0, kind: input, shape index: {}]
  %s1 = inlined_call_operand.hbm [shape: f32[32,256], index: 1, kind: input, shape index: {}]
  %s2 = inlined_call_operand.hbm [shape: f32[2,256], index: 2, kind: output, shape index: {}]
  %s3 = sld [smem:[#allocation0]]
  $region2: #{tpu_custom_call.1} parent=0
    _
  %s5 = ssub.s32 1, %s3
  %s6 = scalar_select 0, %s5, %s3
  %8 = dma.hbm_to_smem %s0, 16, [#allocation4], [#allocation3]
  %9 = dma.done [#allocation3], 16
  %10 = sfence
  $region1: #{tpu_custom_call.1} parent=0
    #allocation6 [shape = 'u32[3]{0}', space=smem, size = 0xc, scoped, tag = 'DMA stride descriptor']
    #allocation8 [shape = 'u32[3]{0}', space=smem, size = 0xc, scoped, tag = 'DMA stride descriptor']
    %s11 = sld [smem:[#allocation4]]
    %p12 = scmp.gt.s32.totalorder %s11, 0
    %s13 = scalar_select %p12, %s11, 0
    %p14 = scmp.lt.s32.totalorder %s13, 31
    %s15 = scalar_select %p14, %s13, 31
    %s16 = sshrl.u32 %s15, 3
    %s17 = sand.u32 %s15, 7
    %s18 = smul.u32 %s16, 16
    %s19 = sadd.s32 %s17, %s18
    %s20 = smul.addr %s19, 16
    %s21 = scalar_lea.hbm %s1, %s20
    %s23 = sshll.u32 1, 14
    %s24 = sxor.u32 4294967295, %s23
    %s27 = sshll.u32 3, 24
    %s28 = sxor.u32 4294967295, %s27
    %s29 = sand.u32 0, %s28
    %s31 = sor.u32 %s29, 0
    %34 = sst [smem:[#allocation6]] 128
    %s35 = scalar_lea.smem [#allocation6], 1
    %36 = sst [smem:[%s35]] 32
    %s37 = scalar_lea.smem [#allocation6], 2
    %38 = sst [smem:[%s37]] 1
    %40 = dma.general %s21, 32, %s2, [#allocation2], [#allocation5], [#allocation6], %s31, 0
    %s41 = sld [smem:[#allocation4 + $0x1]]
    %p42 = scmp.gt.s32.totalorder %s41, 0
    %s43 = scalar_select %p42, %s41, 0
    %p44 = scmp.lt.s32.totalorder %s43, 31
    %s45 = scalar_select %p44, %s43, 31
    %s46 = sshrl.u32 %s45, 3
    %s47 = sand.u32 %s45, 7
    %s48 = smul.u32 %s46, 16
    %s49 = sadd.s32 %s47, %s48
    %s50 = smul.addr %s49, 16
    %s51 = scalar_lea.hbm %s1, %s50
    %s52 = scalar_lea.hbm %s2, 16
    %s54 = sshll.u32 1, 14
    %s55 = sxor.u32 4294967295, %s54
    %s58 = sshll.u32 3, 24
    %s59 = sxor.u32 4294967295, %s58
    %s60 = sand.u32 0, %s59
    %s62 = sor.u32 %s60, 0
    %65 = sst [smem:[#allocation8]] 128
    %s66 = scalar_lea.smem [#allocation8], 1
    %67 = sst [smem:[%s66]] 32
    %s68 = scalar_lea.smem [#allocation8], 2
    %69 = sst [smem:[%s68]] 1
    %71 = dma.general %s51, 32, %s52, [#allocation2], [#allocation7], [#allocation8], %s62, 0
    %s72 = smul.u32 1, 2
    %s73 = sshll.u32 %s72, 4
    %74 = dma.done [#allocation2], %s73
    %s75 = sshll.u32 %s72, 4
    %76 = dma.done [#allocation2], %s75
  %77 = vsyncmov [#allocation2]
  %s78 = vpop.sfrf %77
  %p79 = scmp.eq.s32.totalorder %s78, 0
  %p80 = pneg %p79
  %82 = shalt.err (%p80)

</llo_original>
